<compile_context>
chip_gen: v7x
topology: tpu7x:2x2x1
jax: 0.10.0
libtpu: 0.0.40
codegen_flags: <defaults>
</compile_context>

<pallas_src>
import jax
import jax.numpy as jnp
from jax import lax
from jax.experimental import pallas as pl
from jax.experimental.pallas import tpu as pltpu
import numpy as np


# ------------------------------ tiling helper ------------------------------ #
def _pick_tile(n, target, quantum):
    """Largest multiple of `quantum` <= target that divides n; else n (full dim)."""
    if n <= target:
        return n
    t = (target // quantum) * quantum
    while t >= quantum:
        if n % t == 0:
            return t
        t -= quantum
    return n


# --------------------- pass 1: baseline pre-activation z ------------------- #
def _baseline_z_kernel(adj_ref, x_ref, w1_ref, z_ref):
    # z[i_tile, :] = (adj[i_tile, :] @ x) @ w1   (association picked by shape)
    f = x_ref.shape[1]
    h = w1_ref.shape[1]
    if f <= h:
        agg = jnp.dot(adj_ref[...], x_ref[...], preferred_element_type=jnp.float32)
        z_ref[...] = jnp.dot(agg, w1_ref[...], preferred_element_type=jnp.float32)
    else:
        # TODO(synk): when H < F and the row grid has >1 step, x @ w1 is
        # recomputed per row tile; hoist to its own tiny pass if that matters.
        xw = jnp.dot(x_ref[...], w1_ref[...], preferred_element_type=jnp.float32)
        z_ref[...] = jnp.dot(adj_ref[...], xw, preferred_element_type=jnp.float32)


# -------------------- pass 2: streaming ablation accumulation -------------- #
def _make_ablation_kernel(n_total, f_total):
    inv_n = 1.0 / float(n_total)

    def kernel(x_ref, adj_ref, z_ref, w1_ref, w2row_ref, out_ref, w1s_sc, acc_sc):
        i_idx = pl.program_id(1)

        def _argmax_onehot():
            x_t = x_ref[...]                                    # (TN, F)
            col_ids = lax.broadcasted_iota(jnp.int32, x_t.shape, 1)
            maxv = jnp.max(x_t, axis=1, keepdims=True)          # (TN, 1) = x[n, fi_n]
            cand = jnp.where(x_t == maxv, col_ids, f_total)
            fi = jnp.min(cand, axis=1, keepdims=True)           # first arg-max (torch tie-break)
            onehot = (col_ids == fi).astype(jnp.float32)        # (TN, F)
            return maxv, onehot

        @pl.when(i_idx == 0)
        def _init():
            maxv, onehot = _argmax_onehot()
            # w1s[n, :] = x[n, fi_n] * w1[fi_n, :]  (rank-1 delta row, once per node tile)
            w1s_sc[...] = maxv * jnp.dot(onehot, w1_ref[...],
                                         preferred_element_type=jnp.float32)
            acc_sc[...] = jnp.zeros_like(acc_sc)

        # ---- accumulate this i-tile's contribution (pure VPU, no big intermediate) ----
        z = z_ref[...]                                          # (TI, H)
        a = adj_ref[...]                                        # (TI, TN) = adj[i, n]
        w1s = w1s_sc[...]                                       # (TN, H)
        relu_z = jnp.maximum(z, 0.0)                            # baseline relu
        pert = jnp.maximum(z[:, None, :] - a[:, :, None] * w1s[None, :, :], 0.0)
        d = relu_z[:, None, :] - pert                           # (TI, TN, H)
        s = jnp.sum(d, axis=0)                                  # (TN, H) leading-axis VPU reduce
        acc_sc[...] += jnp.sum(s * w2row_ref[...], axis=1, keepdims=True)   # (TN, 1)

        @pl.when(i_idx == pl.num_programs(1) - 1)
        def _finalize():
            _, onehot = _argmax_onehot()
            # attribution[n, fi_n] = (y - y_pert)[0, label] = acc[n] / N
            out_ref[...] = onehot * (acc_sc[...] * inv_n)

    return kernel


# --------------------------------- wrapper --------------------------------- #
def graph_feature_ablation(x, adj, w1, w2, label):
    N, F = x.shape
    Fh, H = w1.shape
    Hc, C = w2.shape
    assert Fh == F and Hc == H

    # (y - y_pert)[0, label] only needs W2's label column; bias b2 cancels.
    w2row = jnp.take(w2, label, axis=1).reshape(1, H)           # (1, H)

    TIZ = _pick_tile(N, 512, 8)     # row tile for the baseline z pass
    TN = _pick_tile(N, 128, 128)    # perturbed-node tile (last dim of adj block -> 128-quantum)
    TI = _pick_tile(N, 256, 8)      # aggregation (reduction) tile

    # ---- pass 1: z = (adj @ x) @ w1, tiled & pipelined over adj rows ----
    z = pl.pallas_call(
        _baseline_z_kernel,
        out_shape=jax.ShapeDtypeStruct((N, H), jnp.float32),
        grid_spec=pltpu.PrefetchScalarGridSpec(
            num_scalar_prefetch=0,
            grid=(N // TIZ,),
            in_specs=[pl.BlockSpec((TIZ, N), lambda i: (i, 0)),
                      pl.BlockSpec((N, F), lambda i: (0, 0)),
                      pl.BlockSpec((F, H), lambda i: (0, 0))],
            out_specs=pl.BlockSpec((TIZ, H), lambda i: (i, 0))),
        compiler_params=pltpu.CompilerParams(dimension_semantics=("parallel",)),
    )(adj, x, w1)

    # ---- pass 2: per-node ablation as a streaming delta accumulation ----
    kernel = _make_ablation_kernel(N, F)
    return pl.pallas_call(
        kernel,
        out_shape=jax.ShapeDtypeStruct((N, F), jnp.float32),
        grid_spec=pltpu.PrefetchScalarGridSpec(
            num_scalar_prefetch=0,
            grid=(N // TN, N // TI),                             # (node tiles, i tiles)
            in_specs=[pl.BlockSpec((TN, F), lambda n, i: (n, 0)),    # x node tile
                      pl.BlockSpec((TI, TN), lambda n, i: (i, n)),   # adj[i_tile, n_tile]
                      pl.BlockSpec((TI, H), lambda n, i: (i, 0)),    # z[i_tile, :]
                      pl.BlockSpec((F, H), lambda n, i: (0, 0)),     # w1 (resident)
                      pl.BlockSpec((1, H), lambda n, i: (0, 0))],    # w2 label row
            out_specs=pl.BlockSpec((TN, F), lambda n, i: (n, 0)),
            scratch_shapes=[pltpu.VMEM((TN, H), jnp.float32),        # x[n,fi]*w1[fi,:]
                            pltpu.VMEM((TN, 1), jnp.float32)]),      # running accumulator
        compiler_params=pltpu.CompilerParams(
            dimension_semantics=("parallel", "arbitrary")),
    )(x, adj, z, w1, w2row)


# ---------------------------- pure-JAX reference --------------------------- #
def _model_ref(x, adj, w1, w2, b2):
    h = jnp.maximum(adj @ x @ w1, 0.0)
    pooled = jnp.mean(h, axis=0, keepdims=True)
    return pooled @ w2 + b2


def _ablation_ref(x, adj, w1, w2, b2, label):
    N, F = x.shape
    y = _model_ref(x, adj, w1, w2, b2)
    attr = jnp.zeros((N, F), jnp.float32)
    for node in range(N):
        fi = int(jnp.argmax(x[node]))
        xp = x.at[node, fi].set(0.0)
        yp = _model_ref(xp, adj, w1, w2, b2)
        attr = attr.at[node, fi].set((y - yp)[0, int(label[0])])
    return attr


# ---------------------------------- main ----------------------------------- #
if __name__ == "__main__":
    N, F, H, C = 8, 16, 32, 4   # nodes, features, hidden, classes

    key = jax.random.PRNGKey(0)
    kx, kw1, kw2 = jax.random.split(key, 3)

    # node features
    x = jax.random.normal(kx, (N, F), dtype=jnp.float32)

    # ring graph edge_index (undirected) -> dense symmetric-normalized adjacency
    src = np.arange(N)
    dst = (np.arange(N) + 1) % N
    edge_index = np.stack([np.concatenate([src, dst]),
                           np.concatenate([dst, src])], axis=0)
    A = np.zeros((N, N), np.float32)
    A[edge_index[0], edge_index[1]] = 1.0
    A_hat = A + np.eye(N, dtype=np.float32)
    d_inv_sqrt = 1.0 / np.sqrt(A_hat.sum(axis=1))
    adj = jnp.asarray(d_inv_sqrt[:, None] * A_hat * d_inv_sqrt[None, :],
                      dtype=jnp.float32)

    # deterministic model parameters
    w1 = jax.random.normal(kw1, (F, H), dtype=jnp.float32) * (1.0 / np.sqrt(F))
    w2 = jax.random.normal(kw2, (H, C), dtype=jnp.float32) * (1.0 / np.sqrt(H))
    b2 = jnp.zeros((1, C), dtype=jnp.float32)   # reference only; cancels in kernel

    # graph label data.y (single graph)
    label = jnp.array([2], dtype=jnp.int32)

    attribution = graph_feature_ablation(x, adj, w1, w2, label)
    attribution = jax.block_until_ready(attribution)

    ref = _ablation_ref(x, adj, w1, w2, b2, label)
    np.testing.assert_allclose(np.asarray(attribution), np.asarray(ref),
                               atol=1e-3, rtol=1e-3)

    print("KERNEL_OK")
</pallas_src>

<mosaic_0001>
module attributes {stable_mosaic.version = 11 : i64} {
  func.func @_baseline_z_kernel(%arg0: i32, %arg1: memref<8x8xf32, #tpu.memory_space<vmem>>, %arg2: memref<8x16xf32, #tpu.memory_space<vmem>>, %arg3: memref<16x32xf32, #tpu.memory_space<vmem>>, %arg4: memref<8x32xf32, #tpu.memory_space<vmem>>) attributes {dimension_semantics = [#tpu.dimension_semantics<parallel>], iteration_bounds = array<i64: 1>, scalar_prefetch = 0 : i64, scratch_operands = 0 : i64, tpu.core_type = #tpu.core_type<tc>, window_params = [{transform_indices = @transform_0, window_bounds = array<i64: 8, 8>}, {pipeline_mode = #tpu.pipeline_mode<synchronous>, transform_indices = @transform_1, window_bounds = array<i64: 8, 16>}, {pipeline_mode = #tpu.pipeline_mode<synchronous>, transform_indices = @transform_2, window_bounds = array<i64: 16, 32>}, {transform_indices = @transform_3, window_bounds = array<i64: 8, 32>}]} {
    %c0 = arith.constant 0 : index
    %c0_0 = arith.constant 0 : index
    %0 = vector.load %arg1[%c0, %c0_0] : memref<8x8xf32, #tpu.memory_space<vmem>>, vector<8x8xf32>
    %c0_1 = arith.constant 0 : index
    %c0_2 = arith.constant 0 : index
    %1 = vector.load %arg2[%c0_1, %c0_2] : memref<8x16xf32, #tpu.memory_space<vmem>>, vector<8x16xf32>
    %cst = arith.constant dense<0.000000e+00> : vector<8x16xf32>
    %2 = tpu.matmul %0, %1, %cst {dimension_numbers = #tpu.dot_dimension_numbers<[1], [0], [0], [1], [0, 0, 1, 1], [], []>} : vector<8x8xf32>, vector<8x16xf32>, vector<8x16xf32> -> vector<8x16xf32>
    %c0_3 = arith.constant 0 : index
    %c0_4 = arith.constant 0 : index
    %3 = vector.load %arg3[%c0_3, %c0_4] : memref<16x32xf32, #tpu.memory_space<vmem>>, vector<16x32xf32>
    %cst_5 = arith.constant dense<0.000000e+00> : vector<8x32xf32>
    %4 = tpu.matmul %2, %3, %cst_5 {dimension_numbers = #tpu.dot_dimension_numbers<[1], [0], [0], [1], [0, 0, 1, 1], [], []>} : vector<8x16xf32>, vector<16x32xf32>, vector<8x32xf32> -> vector<8x32xf32>
    %c0_6 = arith.constant 0 : index
    %c0_7 = arith.constant 0 : index
    %5 = vector.load %arg4[%c0_6, %c0_7] : memref<8x32xf32, #tpu.memory_space<vmem>>, vector<8x32xf32>
    tpu.vector_store %arg4[%c0_6, %c0_7], %4 {strides = array<i32>} : memref<8x32xf32, #tpu.memory_space<vmem>>, vector<8x32xf32>,
    return
  }
  func.func @transform_0(%arg0: i32) -> (i32, i32) {
    %c0_i32 = arith.constant 0 : i32
    %c0_i32_0 = arith.constant 0 : i32
    return %arg0, %c0_i32 : i32, i32
  }
  func.func @transform_1(%arg0: i32) -> (i32, i32) {
    %c0_i32 = arith.constant 0 : i32
    %c0_i32_0 = arith.constant 0 : i32
    %c0_i32_1 = arith.constant 0 : i32
    return %c0_i32, %c0_i32_0 : i32, i32
  }
  func.func @transform_2(%arg0: i32) -> (i32, i32) {
    %c0_i32 = arith.constant 0 : i32
    %c0_i32_0 = arith.constant 0 : i32
    %c0_i32_1 = arith.constant 0 : i32
    return %c0_i32, %c0_i32_0 : i32, i32
  }
  func.func @transform_3(%arg0: i32) -> (i32, i32) {
    %c0_i32 = arith.constant 0 : i32
    %c0_i32_0 = arith.constant 0 : i32
    return %arg0, %c0_i32 : i32, i32
  }
}

</mosaic_0001>

<llo_original>
// kernel: tpu_custom_call.1
$region0: #{tpu_custom_call.1}
  #allocation0 [shape = 'u32[]', space=smem, size = 0x4, offset = 0x4, fixed_abs, tag = 'smem constant byte address 0x4 - core index']
  #allocation1 [shape = 'u32[144,128]{1,0:T(1,128)}', space=vmem, size = 0x12000, scoped, tag = 'internal scratch']
  %s0 = inlined_call_operand.hbm [shape: f32[8,8], index: 0, kind: input, shape index: {}]
  %s1 = inlined_call_operand.hbm [shape: f32[8,16], index: 1, kind: input, shape index: {}]
  %s2 = inlined_call_operand.hbm [shape: f32[16,32], index: 2, kind: input, shape index: {}]
  %s3 = inlined_call_operand.hbm [shape: f32[8,32], index: 3, kind: output, shape index: {}]
  %s4 = sld [smem:[#allocation0]]
  $region34: #{tpu_custom_call.1} parent=0
    _
  %s6 = ssub.s32 1, %s4
  %s7 = scalar_select 0, %s6, %s4
  $region1: #{tpu_custom_call.1} parent=0
    #allocation2 [shape = 'u8[4096]{0}', space=vmem, size = 0x1000, scoped, tag = 'input window, operand 0, single buffered']
    #allocation3 [shape = 's32[1]{0}', space=sflag, size = 0x4, scoped, tag = 'scoped memory for tpu_custom_call.1']
    #allocation4 [shape = 's32[1]{0}', space=sflag, size = 0x4, scoped, tag = 'scoped memory for tpu_custom_call.1']
    #allocation5 [shape = 'u8[4096]{0}', space=vmem, size = 0x1000, scoped, tag = 'input window, operand 1, single buffered']
    #allocation6 [shape = 's32[1]{0}', space=sflag, size = 0x4, scoped, tag = 'scoped memory for tpu_custom_call.1']
    #allocation7 [shape = 'u8[8192]{0}', space=vmem, size = 0x2000, scoped, tag = 'input window, operand 2, single buffered']
    #allocation8 [shape = 'u8[4096]{0}', space=vmem, size = 0x1000, scoped, tag = 'output window, operand 0, single buffered']
    %8 = vsyncpa [#allocation3], 0
    %9 = vsyncpa [#allocation6], 0
    %10 = vsyncpa [#allocation4], 0
    // Predicated region
    $region2: #{tpu_custom_call.1} parent=1 // pred_check
      _
    $region3: #{tpu_custom_call.1} parent=1 // pred_check_branch
      %12 = sbr.rel (0) target = $region5
    $region4: #{tpu_custom_call.1} parent=1 // pred_region
      %s14 = ssub.s32 128, 128
      %15 = vsyncadd [#allocation3], %s14
      %s17 = sshll.u32 [#allocation2], 4
      %s18 = int_to_ptr.vmem [resolvable:$true] %s17
      %20 = dma.hbm_to_vmem [thread:$0]  %s0, 128, %s18, [#allocation3]
    $region5: #{tpu_custom_call.1} parent=1 // pred_fallthru
      _
    // Predicated region
    $region6: #{tpu_custom_call.1} parent=1 // pred_check
      _
    $region7: #{tpu_custom_call.1} parent=1 // pred_check_branch
      %22 = sbr.rel (0) target = $region9
    $region8: #{tpu_custom_call.1} parent=1 // pred_region
      %s24 = ssub.s32 128, 128
      %25 = vsyncadd [#allocation6], %s24
      %s27 = sshll.u32 [#allocation5], 4
      %s28 = int_to_ptr.vmem [resolvable:$true] %s27
      %30 = dma.hbm_to_vmem [thread:$0]  %s1, 128, %s28, [#allocation6]
    $region9: #{tpu_custom_call.1} parent=1 // pred_fallthru
      _
    // Predicated region
    $region10: #{tpu_custom_call.1} parent=1 // pred_check
      _
    $region11: #{tpu_custom_call.1} parent=1 // pred_check_branch
      %32 = sbr.rel (0) target = $region13
    $region12: #{tpu_custom_call.1} parent=1 // pred_region
      %s34 = ssub.s32 256, 256
      %35 = vsyncadd [#allocation6], %s34
      %s36 = sshll.u32 [#allocation7], 4
      %s37 = int_to_ptr.vmem [resolvable:$true] %s36
      %42 = dma.hbm_to_vmem [thread:$0]  %s2, 256, %s37, [#allocation6], 128, 128, 8
    $region13: #{tpu_custom_call.1} parent=1 // pred_fallthru
      _
    // Predicated region
    $region14: #{tpu_custom_call.1} parent=1 // pred_check
      _
    $region15: #{tpu_custom_call.1} parent=1 // pred_check_branch
      %44 = sbr.rel (0) target = $region17
    $region16: #{tpu_custom_call.1} parent=1 // pred_region
      %45 = dma.done [#allocation3], 128
    $region17: #{tpu_custom_call.1} parent=1 // pred_fallthru
      _
    // Predicated region
    $region18: #{tpu_custom_call.1} parent=1 // pred_check
      _
    $region19: #{tpu_custom_call.1} parent=1 // pred_check_branch
      %47 = sbr.rel (0) target = $region21
    $region20: #{tpu_custom_call.1} parent=1 // pred_region
      %48 = dma.done [#allocation6], 128
    $region21: #{tpu_custom_call.1} parent=1 // pred_fallthru
      _
    // Predicated region
    $region22: #{tpu_custom_call.1} parent=1 // pred_check
      _
    $region23: #{tpu_custom_call.1} parent=1 // pred_check_branch
      %50 = sbr.rel (0) target = $region25
    $region24: #{tpu_custom_call.1} parent=1 // pred_region
      %51 = dma.done [#allocation6], 256
    $region25: #{tpu_custom_call.1} parent=1 // pred_fallthru
      _
    %v52 = vld [vmem:[#allocation2] sm:$0xff]
    %v53 = vld [vmem:[#allocation5] sm:$0xff]
    %vm54 = vcmask 64512
    %v56 = vsel %vm54, %v52, 0
    %58 = vmatprep.subr.mxu0 0.0
    %59 = vmatpush1.msra.mxu0 %v53
    %60 = vmatprep.subr.mxu0 0.0
    %61 = vmatpush1.msra.mxu0 0.0
    %62 = vmatprep.subr.mxu0 0.0
    %63 = vmatpush1.msra.mxu0 0.0
    %64 = vmatprep.subr.mxu0 0.0
    %65 = vmatpush1.msra.mxu0 0.0
    %66 = vmatprep.subr.mxu0 0.0
    %67 = vmatpush1.msra.mxu0 0.0
    %68 = vmatprep.subr.mxu0 0.0
    %69 = vmatpush1.msra.mxu0 0.0
    %70 = vmatprep.subr.mxu0 0.0
    %71 = vmatpush1.msra.mxu0 0.0
    %72 = vmatprep.subr.mxu0 0.0
    %73 = vmatpush1.msra.mxu0 0.0
    %74 = vmatprep.subr.mxu0 0.0
    %75 = vmatpush1.msra.mxu0 0.0
    %76 = vmatprep.subr.mxu0 0.0
    %77 = vmatpush1.msra.mxu0 0.0
    %78 = vmatprep.subr.mxu0 0.0
    %79 = vmatpush1.msra.mxu0 0.0
    %80 = vmatprep.subr.mxu0 0.0
    %81 = vmatpush1.msra.mxu0 0.0
    %82 = vmatprep.subr.mxu0 0.0
    %83 = vmatpush1.msra.mxu0 0.0
    %84 = vmatprep.subr.mxu0 0.0
    %85 = vmatpush1.msra.mxu0 0.0
    %86 = vmatprep.subr.mxu0 0.0
    %87 = vmatpush1.msra.mxu0 0.0
    %88 = vmatprep.subr.mxu0 0.0
    %89 = vmatpush1.msra.mxu0 0.0
    %90 = vmatprep.subr.mxu0 0.0
    %91 = vmatpush1.msra.mxu0 0.0
    %92 = vmatprep.subr.mxu0 0.0
    %93 = vmatpush1.msra.mxu0 0.0
    %94 = vmatprep.subr.mxu0 0.0
    %95 = vmatpush1.msra.mxu0 0.0
    %96 = vmatprep.subr.mxu0 0.0
    %97 = vmatpush1.msra.mxu0 0.0
    %98 = vmatprep.subr.mxu0 0.0
    %99 = vmatpush1.msra.mxu0 0.0
    %100 = vmatprep.subr.mxu0 0.0
    %101 = vmatpush1.msra.mxu0 0.0
    %102 = vmatprep.subr.mxu0 0.0
    %103 = vmatpush1.msra.mxu0 0.0
    %104 = vmatprep.subr.mxu0 0.0
    %105 = vmatpush1.msra.mxu0 0.0
    %106 = vmatprep.subr.mxu0 0.0
    %107 = vmatpush1.msra.mxu0 0.0
    %108 = vmatprep.subr.mxu0 0.0
    %109 = vmatpush1.msra.mxu0 0.0
    %110 = vmatprep.subr.mxu0 0.0
    %111 = vmatpush1.msra.mxu0 0.0
    %112 = vmatprep.subr.mxu0 0.0
    %113 = vmatpush1.msra.mxu0 0.0
    %114 = vmatprep.subr.mxu0 0.0
    %115 = vmatpush1.msra.mxu0 0.0
    %116 = vmatprep.subr.mxu0 0.0
    %117 = vmatpush1.msra.mxu0 0.0
    %118 = vmatprep.subr.mxu0 0.0
    %119 = vmatpush1.msra.mxu0 0.0
    %120 = vmatprep.subr.mxu0 0.0
    %121 = vmatpush1.msra.mxu0 0.0
    %122 = vmatprep.mubr.f32.mxu0 0.0
    %123 = vmatmul.mubr.f32.gmra.mrb[0].mxu0 %v56
    %v124 = vpop.f32.mrb[0].mxu0
    %v125 = vadd.f32 0.0, %v124
    %v126 = vpop.f32.mrb[0].mxu0
    %127 = vdwg.mxu0
    %v128 = vld [vmem:[#allocation7] sm:$0xff]
    %v129 = vld [vmem:[#allocation7 + $0x8] sm:$0xff]
    %vm130 = vcmask 130048
    %v132 = vsel %vm130, %v125, 0
    %134 = vmatprep.subr.mxu0 0.0
    %135 = vmatpush1.msra.mxu0 %v128
    %136 = vmatprep.subr.mxu0 0.0
    %137 = vmatpush1.msra.mxu0 %v129
    %138 = vmatprep.subr.mxu0 0.0
    %139 = vmatpush1.msra.mxu0 0.0
    %140 = vmatprep.subr.mxu0 0.0
    %141 = vmatpush1.msra.mxu0 0.0
    %142 = vmatprep.subr.mxu0 0.0
    %143 = vmatpush1.msra.mxu0 0.0
    %144 = vmatprep.subr.mxu0 0.0
    %145 = vmatpush1.msra.mxu0 0.0
    %146 = vmatprep.subr.mxu0 0.0
    %147 = vmatpush1.msra.mxu0 0.0
    %148 = vmatprep.subr.mxu0 0.0
    %149 = vmatpush1.msra.mxu0 0.0
    %150 = vmatprep.subr.mxu0 0.0
    %151 = vmatpush1.msra.mxu0 0.0
    %152 = vmatprep.subr.mxu0 0.0
    %153 = vmatpush1.msra.mxu0 0.0
    %154 = vmatprep.subr.mxu0 0.0
    %155 = vmatpush1.msra.mxu0 0.0
    %156 = vmatprep.subr.mxu0 0.0
    %157 = vmatpush1.msra.mxu0 0.0
    %158 = vmatprep.subr.mxu0 0.0
    %159 = vmatpush1.msra.mxu0 0.0
    %160 = vmatprep.subr.mxu0 0.0
    %161 = vmatpush1.msra.mxu0 0.0
    %162 = vmatprep.subr.mxu0 0.0
    %163 = vmatpush1.msra.mxu0 0.0
    %164 = vmatprep.subr.mxu0 0.0
    %165 = vmatpush1.msra.mxu0 0.0
    %166 = vmatprep.subr.mxu0 0.0
    %167 = vmatpush1.msra.mxu0 0.0
    %168 = vmatprep.subr.mxu0 0.0
    %169 = vmatpush1.msra.mxu0 0.0
    %170 = vmatprep.subr.mxu0 0.0
    %171 = vmatpush1.msra.mxu0 0.0
    %172 = vmatprep.subr.mxu0 0.0
    %173 = vmatpush1.msra.mxu0 0.0
    %174 = vmatprep.subr.mxu0 0.0
    %175 = vmatpush1.msra.mxu0 0.0
    %176 = vmatprep.subr.mxu0 0.0
    %177 = vmatpush1.msra.mxu0 0.0
    %178 = vmatprep.subr.mxu0 0.0
    %179 = vmatpush1.msra.mxu0 0.0
    %180 = vmatprep.subr.mxu0 0.0
    %181 = vmatpush1.msra.mxu0 0.0
    %182 = vmatprep.subr.mxu0 0.0
    %183 = vmatpush1.msra.mxu0 0.0
    %184 = vmatprep.subr.mxu0 0.0
    %185 = vmatpush1.msra.mxu0 0.0
    %186 = vmatprep.subr.mxu0 0.0
    %187 = vmatpush1.msra.mxu0 0.0
    %188 = vmatprep.subr.mxu0 0.0
    %189 = vmatpush1.msra.mxu0 0.0
    %190 = vmatprep.subr.mxu0 0.0
    %191 = vmatpush1.msra.mxu0 0.0
    %192 = vmatprep.subr.mxu0 0.0
    %193 = vmatpush1.msra.mxu0 0.0
    %194 = vmatprep.subr.mxu0 0.0
    %195 = vmatpush1.msra.mxu0 0.0
    %196 = vmatprep.subr.mxu0 0.0
    %197 = vmatpush1.msra.mxu0 0.0
    %198 = vmatprep.mubr.f32.mxu0 0.0
    %199 = vmatmul.mubr.f32.gmra.mrb[0].mxu0 %v132
    %v200 = vpop.f32.mrb[0].mxu0
    %v201 = vadd.f32 0.0, %v200
    %v202 = vpop.f32.mrb[0].mxu0
    %203 = vdwg.mxu0
    %vm204 = vcmask 261120
    %205 = vst.msk [vmem:[#allocation8] sm:$0xff] %vm204, %v201
    // Predicated region
    $region26: #{tpu_custom_call.1} parent=1 // pred_check
      _
    $region27: #{tpu_custom_call.1} parent=1 // pred_check_branch
      %207 = sbr.rel (0) target = $region29
    $region28: #{tpu_custom_call.1} parent=1 // pred_region
      %s209 = ssub.s32 128, 128
      %210 = vsyncadd [#allocation4], %s209
      %s212 = sshll.u32 [#allocation8], 4
      %s213 = int_to_ptr.vmem [resolvable:$true] %s212
      %215 = dma.vmem_to_hbm [thread:$0]  %s213, 128, %s3, [#allocation4]
    $region29: #{tpu_custom_call.1} parent=1 // pred_fallthru
      _
    // Predicated region
    $region30: #{tpu_custom_call.1} parent=1 // pred_check
      _
    $region31: #{tpu_custom_call.1} parent=1 // pred_check_branch
      %217 = sbr.rel (0) target = $region33
    $region32: #{tpu_custom_call.1} parent=1 // pred_region
      %218 = dma.done [#allocation4], 128
    $region33: #{tpu_custom_call.1} parent=1 // pred_fallthru
      _
    %219 = vsyncpa [#allocation3], 1
    %220 = vsyncpa [#allocation6], 1
    %221 = vsyncpa [#allocation4], 1

</llo_original>
